<compile_context>
chip_gen: v7x
topology: tpu7x:2x2x1
jax: 0.10.0
libtpu: 0.0.40
codegen_flags: <defaults>
</compile_context>

<pallas_src>
import functools

import jax
import jax.numpy as jnp
from jax.experimental import pallas as pl
from jax.experimental.pallas import tpu as pltpu


def _round_up(x, m):
    return ((x + m - 1) // m) * m


def _sigmoid(z, *, approx):
    # 1 / (1 + exp(-z)).  exp goes to the EUP; with approx=True the reciprocal
    # also goes to the EUP slot (vrcp) instead of a VALU divide.
    return pl.reciprocal(1.0 + jnp.exp(-z), approx=approx)


def _mlp_kernel(x_ref, w1t_ref, b1_ref, w2t_ref, b2_ref, w3t_ref, b3_ref, o_ref,
                *, compute_dtype, approx_sigmoid):
    if compute_dtype is None:
        cast = lambda a: a
    else:
        cast = lambda a: a.astype(compute_dtype)

    # Put batch on the lane axis: (tb, n_in) -> (n_in, tb).  One XLU transpose
    # per tile (f32, before any cast); everything downstream is lane-dense.
    xt = cast(x_ref[...].T)                                       # (n_in, tb)

    # hidden1 + sigmoid:  z1^T = W1^T x^T + b1   (bias is (n_hid, 1) broadcast)
    z1 = jnp.dot(w1t_ref[...], xt, preferred_element_type=jnp.float32)
    h1 = _sigmoid(z1 + b1_ref[...], approx=approx_sigmoid)        # (n_hid, tb) f32

    # hidden2 + sigmoid
    z2 = jnp.dot(w2t_ref[...], cast(h1), preferred_element_type=jnp.float32)
    h2 = _sigmoid(z2 + b2_ref[...], approx=approx_sigmoid)        # (n_hid, tb) f32

    # output layer -> lane-dense (n_out, tb) full-block store
    y = jnp.dot(w3t_ref[...], cast(h2), preferred_element_type=jnp.float32)
    o_ref[...] = (y + b3_ref[...]).astype(o_ref.dtype)


def network_forward(x, params, *, block_batch=2048, compute_dtype=None,
                    approx_sigmoid=False):
    """Forward pass of the 3-layer MLP as one batch-tiled Pallas kernel.

    x: (B, n_input) float32
    params: dict with w1 (n_in, n_hid), b1 (1, n_hid), w2 (n_hid, n_hid),
            b2 (1, n_hid), w3 (n_hid, n_out), b3 (1, n_out)
    compute_dtype: None -> f32 matmuls (matches torch semantics closely);
                   jnp.bfloat16 -> bf16 MXU inputs (weights pre-cast once in
                   the wrapper), f32 accumulation.
    approx_sigmoid: route the sigmoid reciprocal to the EUP (approximate).
    """
    B, n_in = x.shape
    n_hid = params["w1"].shape[1]
    n_out = params["w3"].shape[1]
    dtype = x.dtype

    # --- batch tiling --------------------------------------------------------
    b_round = _round_up(B, 8)
    if b_round >= 1024:
        # At least two grid steps so ("parallel",) can shard tiles across the
        # two TensorCores on v7x; tiles are multiples of 128 so the transposed
        # output block (n_out, tb) is lane-aligned.
        nt = max(2, pl.cdiv(b_round, block_batch))
        tb = _round_up(pl.cdiv(b_round, nt), 128)
        b_pad = _round_up(b_round, tb)
    else:
        tb = b_round
        b_pad = b_round
    nb = b_pad // tb
    if b_pad != B:
        x = jnp.pad(x, ((0, b_pad - B), (0, 0)))

    # --- parameters: transposed (out_features, in_features) layout -----------
    # Tiny one-time ops in the wrapper; the weights are VMEM-resident across
    # all grid steps (constant index_map -> DMA'd once).  For the bf16 path the
    # resident weights are cast here (halves their DMA/VMEM), not per-step.
    w_dtype = dtype if compute_dtype is None else compute_dtype
    w1t = params["w1"].T.astype(w_dtype)                    # (n_hid, n_in)
    w2t = params["w2"].T.astype(w_dtype)                    # (n_hid, n_hid)
    w3t = params["w3"].T.astype(w_dtype)                    # (n_out, n_hid)
    b1 = params["b1"].reshape(n_hid, 1).astype(jnp.float32)
    b2 = params["b2"].reshape(n_hid, 1).astype(jnp.float32)
    b3 = params["b3"].reshape(n_out, 1).astype(jnp.float32)

    # --- VMEM budget (lane/sublane-rounded), ~2x headroom, <=64 MiB (v7x) ----
    def tile_bytes(r, c, itemsize=4):
        return _round_up(r, 8) * _round_up(c, 128) * itemsize

    w_size = jnp.dtype(w_dtype).itemsize
    est = (2 * tile_bytes(tb, n_in)                          # double-buffered x tiles
           + 2 * tile_bytes(n_out, tb)                       # double-buffered out tiles
           + 2 * (tile_bytes(n_hid, n_in, w_size)            # resident weights
                  + tile_bytes(n_hid, n_hid, w_size)
                  + tile_bytes(n_out, n_hid, w_size)
                  + 2 * tile_bytes(n_hid, 1)                 # biases
                  + tile_bytes(n_out, 1))
           + tile_bytes(n_in, tb)                            # x^T
           + 4 * tile_bytes(n_hid, tb)                       # z1/h1/z2/h2
           + tile_bytes(n_out, tb))                          # y
    vmem_limit = int(min(64 * 1024 * 1024, max(4 * 1024 * 1024, 2 * est)))

    kernel = functools.partial(_mlp_kernel,
                               compute_dtype=compute_dtype,
                               approx_sigmoid=approx_sigmoid)

    resident = lambda a: pl.BlockSpec(a.shape, lambda i: (0, 0))

    out_t = pl.pallas_call(
        kernel,
        out_shape=jax.ShapeDtypeStruct((n_out, b_pad), dtype),
        grid=(nb,),
        in_specs=[
            pl.BlockSpec((tb, n_in), lambda i: (i, 0)),      # streamed x tiles
            resident(w1t), resident(b1),
            resident(w2t), resident(b2),
            resident(w3t), resident(b3),
        ],
        out_specs=pl.BlockSpec((n_out, tb), lambda i: (0, i)),  # lane-dense store
        compiler_params=pltpu.CompilerParams(
            dimension_semantics=("parallel",),               # shard tiles across TCs (v7x)
            vmem_limit_bytes=vmem_limit,
        ),
    )(x, w1t, b1, w2t, b2, w3t, b3)

    # Tiny (n_out, B) -> (B, n_out) transpose outside the kernel.
    return out_t[:, :B].T


def init_params(key, n_input, n_hidden, n_output):
    """Deterministic init mimicking torch.nn.Linear (uniform +-1/sqrt(fan_in))."""
    ks = jax.random.split(key, 6)

    def linear(kw, kb, fan_in, fan_out):
        bound = 1.0 / jnp.sqrt(fan_in)
        w = jax.random.uniform(kw, (fan_in, fan_out), jnp.float32, -bound, bound)
        b = jax.random.uniform(kb, (1, fan_out), jnp.float32, -bound, bound)
        return w, b

    w1, b1 = linear(ks[0], ks[1], n_input, n_hidden)
    w2, b2 = linear(ks[2], ks[3], n_hidden, n_hidden)
    w3, b3 = linear(ks[4], ks[5], n_hidden, n_output)
    return dict(w1=w1, b1=b1, w2=w2, b2=b2, w3=w3, b3=b3)


def reference_forward(x, p):
    h1 = jax.nn.sigmoid(x @ p["w1"] + p["b1"])
    h2 = jax.nn.sigmoid(h1 @ p["w2"] + p["b2"])
    return h2 @ p["w3"] + p["b3"]


if __name__ == "__main__":
    n_input, n_hidden, n_output = 16, 32, 4

    key = jax.random.PRNGKey(0)
    k_x, k_x2, k_p = jax.random.split(key, 3)
    params = init_params(k_p, n_input, n_hidden, n_output)

    # Small batch (single tile), default f32/exact path: matches the
    # PyTorch-equivalent reference tightly.
    x = jax.random.normal(k_x, (8, n_input), jnp.float32)
    y_ref = reference_forward(x, params)
    y = network_forward(x, params)
    jax.block_until_ready(y)
    assert y.shape == (8, n_output)
    assert jnp.allclose(y, y_ref, atol=1e-5, rtol=1e-5)

    # Larger batch: exercises the multi-tile path (>=2 grid steps, 128-aligned
    # lane tiles, megacore-parallel batch axis on v7x).
    x2 = jax.random.normal(k_x2, (1536, n_input), jnp.float32)
    y2 = network_forward(x2, params)
    jax.block_until_ready(y2)
    assert y2.shape == (1536, n_output)
    assert jnp.allclose(y2, reference_forward(x2, params), atol=1e-5, rtol=1e-5)

    # Throughput knob (secondary to tiling/layout): bf16 MXU inputs with
    # wrapper-precast resident weights + EUP approx-reciprocal sigmoid;
    # f32 accumulation keeps the result close to the reference.
    y_fast = network_forward(x, params, compute_dtype=jnp.bfloat16,
                             approx_sigmoid=True)
    jax.block_until_ready(y_fast)
    assert y_fast.shape == (8, n_output)
    assert jnp.allclose(y_fast, y_ref, atol=5e-2, rtol=5e-2)

    print("KERNEL_OK")
</pallas_src>

<mosaic_0001>
module attributes {stable_mosaic.version = 11 : i64} {
  func.func @_mlp_kernel(%arg0: i32, %arg1: memref<8x16xf32, #tpu.memory_space<vmem>>, %arg2: memref<32x16xf32, #tpu.memory_space<vmem>>, %arg3: memref<32x1xf32, #tpu.memory_space<vmem>>, %arg4: memref<32x32xf32, #tpu.memory_space<vmem>>, %arg5: memref<32x1xf32, #tpu.memory_space<vmem>>, %arg6: memref<4x32xf32, #tpu.memory_space<vmem>>, %arg7: memref<4x1xf32, #tpu.memory_space<vmem>>, %arg8: memref<4x8xf32, #tpu.memory_space<vmem>>) attributes {dimension_semantics = [#tpu.dimension_semantics<parallel>], iteration_bounds = array<i64: 1>, scalar_prefetch = 0 : i64, scratch_operands = 0 : i64, tpu.core_type = #tpu.core_type<tc>, window_params = [{transform_indices = @transform_0, window_bounds = array<i64: 8, 16>}, {pipeline_mode = #tpu.pipeline_mode<synchronous>, transform_indices = @transform_1, window_bounds = array<i64: 32, 16>}, {pipeline_mode = #tpu.pipeline_mode<synchronous>, transform_indices = @transform_2, window_bounds = array<i64: 32, 1>}, {pipeline_mode = #tpu.pipeline_mode<synchronous>, transform_indices = @transform_3, window_bounds = array<i64: 32, 32>}, {pipeline_mode = #tpu.pipeline_mode<synchronous>, transform_indices = @transform_4, window_bounds = array<i64: 32, 1>}, {pipeline_mode = #tpu.pipeline_mode<synchronous>, transform_indices = @transform_5, window_bounds = array<i64: 4, 32>}, {pipeline_mode = #tpu.pipeline_mode<synchronous>, transform_indices = @transform_6, window_bounds = array<i64: 4, 1>}, {transform_indices = @transform_7, window_bounds = array<i64: 4, 8>}]} {
    %c0 = arith.constant 0 : index
    %c0_0 = arith.constant 0 : index
    %0 = vector.load %arg1[%c0, %c0_0] : memref<8x16xf32, #tpu.memory_space<vmem>>, vector<8x16xf32>
    %1 = tpu.transpose %0, [1, 0] : vector<8x16xf32> -> vector<16x8xf32>
    %c0_1 = arith.constant 0 : index
    %c0_2 = arith.constant 0 : index
    %2 = vector.load %arg2[%c0_1, %c0_2] : memref<32x16xf32, #tpu.memory_space<vmem>>, vector<32x16xf32>
    %cst = arith.constant dense<0.000000e+00> : vector<32x8xf32>
    %3 = tpu.matmul %2, %1, %cst {dimension_numbers = #tpu.dot_dimension_numbers<[1], [0], [0], [1], [0, 0, 1, 1], [], []>} : vector<32x16xf32>, vector<16x8xf32>, vector<32x8xf32> -> vector<32x8xf32>
    %c0_3 = arith.constant 0 : index
    %c0_4 = arith.constant 0 : index
    %4 = vector.load %arg3[%c0_3, %c0_4] : memref<32x1xf32, #tpu.memory_space<vmem>>, vector<32x1xf32>
    %5 = vector.broadcast %4 : vector<32x1xf32> to vector<32x8xf32>
    %6 = arith.addf %3, %5 : vector<32x8xf32>
    %cst_5 = arith.constant 0.000000e+00 : f32
    %7 = vector.broadcast %cst_5 : f32 to vector<32x8xf32>
    %8 = arith.subf %7, %6 : vector<32x8xf32>
    %9 = math.exp %8 : vector<32x8xf32>
    %cst_6 = arith.constant 1.000000e+00 : f32
    %10 = vector.broadcast %cst_6 : f32 to vector<32x8xf32>
    %11 = arith.addf %10, %9 : vector<32x8xf32>
    %12 = tpu.reciprocal %11 : vector<32x8xf32> -> vector<32x8xf32>
    %c0_7 = arith.constant 0 : index
    %c0_8 = arith.constant 0 : index
    %13 = vector.load %arg4[%c0_7, %c0_8] : memref<32x32xf32, #tpu.memory_space<vmem>>, vector<32x32xf32>
    %cst_9 = arith.constant dense<0.000000e+00> : vector<32x8xf32>
    %14 = tpu.matmul %13, %12, %cst_9 {dimension_numbers = #tpu.dot_dimension_numbers<[1], [0], [0], [1], [0, 0, 1, 1], [], []>} : vector<32x32xf32>, vector<32x8xf32>, vector<32x8xf32> -> vector<32x8xf32>
    %c0_10 = arith.constant 0 : index
    %c0_11 = arith.constant 0 : index
    %15 = vector.load %arg5[%c0_10, %c0_11] : memref<32x1xf32, #tpu.memory_space<vmem>>, vector<32x1xf32>
    %16 = vector.broadcast %15 : vector<32x1xf32> to vector<32x8xf32>
    %17 = arith.addf %14, %16 : vector<32x8xf32>
    %cst_12 = arith.constant 0.000000e+00 : f32
    %18 = vector.broadcast %cst_12 : f32 to vector<32x8xf32>
    %19 = arith.subf %18, %17 : vector<32x8xf32>
    %20 = math.exp %19 : vector<32x8xf32>
    %cst_13 = arith.constant 1.000000e+00 : f32
    %21 = vector.broadcast %cst_13 : f32 to vector<32x8xf32>
    %22 = arith.addf %21, %20 : vector<32x8xf32>
    %23 = tpu.reciprocal %22 : vector<32x8xf32> -> vector<32x8xf32>
    %c0_14 = arith.constant 0 : index
    %c0_15 = arith.constant 0 : index
    %24 = vector.load %arg6[%c0_14, %c0_15] : memref<4x32xf32, #tpu.memory_space<vmem>>, vector<4x32xf32>
    %cst_16 = arith.constant dense<0.000000e+00> : vector<4x8xf32>
    %25 = tpu.matmul %24, %23, %cst_16 {dimension_numbers = #tpu.dot_dimension_numbers<[1], [0], [0], [1], [0, 0, 1, 1], [], []>} : vector<4x32xf32>, vector<32x8xf32>, vector<4x8xf32> -> vector<4x8xf32>
    %c0_17 = arith.constant 0 : index
    %c0_18 = arith.constant 0 : index
    %26 = vector.load %arg7[%c0_17, %c0_18] : memref<4x1xf32, #tpu.memory_space<vmem>>, vector<4x1xf32>
    %27 = vector.broadcast %26 : vector<4x1xf32> to vector<4x8xf32>
    %28 = arith.addf %25, %27 : vector<4x8xf32>
    %c0_19 = arith.constant 0 : index
    %c0_20 = arith.constant 0 : index
    %29 = vector.load %arg8[%c0_19, %c0_20] : memref<4x8xf32, #tpu.memory_space<vmem>>, vector<4x8xf32>
    tpu.vector_store %arg8[%c0_19, %c0_20], %28 {strides = array<i32>} : memref<4x8xf32, #tpu.memory_space<vmem>>, vector<4x8xf32>,
    return
  }
  func.func @transform_0(%arg0: i32) -> (i32, i32) {
    %c0_i32 = arith.constant 0 : i32
    %c0_i32_0 = arith.constant 0 : i32
    return %arg0, %c0_i32 : i32, i32
  }
  func.func @transform_1(%arg0: i32) -> (i32, i32) {
    %c0_i32 = arith.constant 0 : i32
    %c0_i32_0 = arith.constant 0 : i32
    %c0_i32_1 = arith.constant 0 : i32
    return %c0_i32, %c0_i32_0 : i32, i32
  }
  func.func @transform_2(%arg0: i32) -> (i32, i32) {
    %c0_i32 = arith.constant 0 : i32
    %c0_i32_0 = arith.constant 0 : i32
    %c0_i32_1 = arith.constant 0 : i32
    return %c0_i32, %c0_i32_0 : i32, i32
  }
  func.func @transform_3(%arg0: i32) -> (i32, i32) {
    %c0_i32 = arith.constant 0 : i32
    %c0_i32_0 = arith.constant 0 : i32
    %c0_i32_1 = arith.constant 0 : i32
    return %c0_i32, %c0_i32_0 : i32, i32
  }
  func.func @transform_4(%arg0: i32) -> (i32, i32) {
    %c0_i32 = arith.constant 0 : i32
    %c0_i32_0 = arith.constant 0 : i32
    %c0_i32_1 = arith.constant 0 : i32
    return %c0_i32, %c0_i32_0 : i32, i32
  }
  func.func @transform_5(%arg0: i32) -> (i32, i32) {
    %c0_i32 = arith.constant 0 : i32
    %c0_i32_0 = arith.constant 0 : i32
    %c0_i32_1 = arith.constant 0 : i32
    return %c0_i32, %c0_i32_0 : i32, i32
  }
  func.func @transform_6(%arg0: i32) -> (i32, i32) {
    %c0_i32 = arith.constant 0 : i32
    %c0_i32_0 = arith.constant 0 : i32
    %c0_i32_1 = arith.constant 0 : i32
    return %c0_i32, %c0_i32_0 : i32, i32
  }
  func.func @transform_7(%arg0: i32) -> (i32, i32) {
    %c0_i32 = arith.constant 0 : i32
    %c0_i32_0 = arith.constant 0 : i32
    return %c0_i32, %arg0 : i32, i32
  }
}

</mosaic_0001>

<llo_original>
// kernel: tpu_custom_call.1
$region0: #{tpu_custom_call.1}
  #allocation0 [shape = 'u32[]', space=smem, size = 0x4, offset = 0x4, fixed_abs, tag = 'smem constant byte address 0x4 - core index']
  #allocation1 [shape = 'u32[144,128]{1,0:T(1,128)}', space=vmem, size = 0x12000, scoped, tag = 'internal scratch']
  %s0 = inlined_call_operand.vmem [shape: f32[8,16], index: 0, kind: input, shape index: {}]
  %s1 = inlined_call_operand.vmem [shape: f32[32,16], index: 1, kind: input, shape index: {}]
  %s2 = inlined_call_operand.vmem [shape: f32[32,1], index: 2, kind: input, shape index: {}]
  %s3 = inlined_call_operand.vmem [shape: f32[32,32], index: 3, kind: input, shape index: {}]
  %s4 = inlined_call_operand.vmem [shape: f32[32,1], index: 4, kind: input, shape index: {}]
  %s5 = inlined_call_operand.vmem [shape: f32[4,32], index: 5, kind: input, shape index: {}]
  %s6 = inlined_call_operand.vmem [shape: f32[4,1], index: 6, kind: input, shape index: {}]
  %s7 = inlined_call_operand.hbm [shape: f32[4,8], index: 7, kind: output, shape index: {}]
  %s8 = sld [smem:[#allocation0]]
  $region38: #{tpu_custom_call.1} parent=0
    _
  %s10 = ssub.s32 1, %s8
  %s11 = scalar_select 0, %s10, %s8
  $region1: #{tpu_custom_call.1} parent=0
    #allocation2 [shape = 'u8[2048]{0}', space=vmem, size = 0x800, scoped, tag = 'output window, operand 0, single buffered']
    #allocation3 [shape = 's32[1]{0}', space=sflag, size = 0x4, scoped, tag = 'scoped memory for tpu_custom_call.1']
    %12 = vsyncpa [#allocation3], 0
    // Predicated region
    $region2: #{tpu_custom_call.1} parent=1 // pred_check
      _
    $region3: #{tpu_custom_call.1} parent=1 // pred_check_branch
      %14 = sbr.rel (0) target = $region5
    $region4: #{tpu_custom_call.1} parent=1 // pred_region
      _
    $region5: #{tpu_custom_call.1} parent=1 // pred_fallthru
      _
    // Predicated region
    $region6: #{tpu_custom_call.1} parent=1 // pred_check
      _
    $region7: #{tpu_custom_call.1} parent=1 // pred_check_branch
      %16 = sbr.rel (0) target = $region9
    $region8: #{tpu_custom_call.1} parent=1 // pred_region
      _
    $region9: #{tpu_custom_call.1} parent=1 // pred_fallthru
      _
    // Predicated region
    $region10: #{tpu_custom_call.1} parent=1 // pred_check
      _
    $region11: #{tpu_custom_call.1} parent=1 // pred_check_branch
      %18 = sbr.rel (0) target = $region13
    $region12: #{tpu_custom_call.1} parent=1 // pred_region
      _
    $region13: #{tpu_custom_call.1} parent=1 // pred_fallthru
      _
    // Predicated region
    $region14: #{tpu_custom_call.1} parent=1 // pred_check
      _
    $region15: #{tpu_custom_call.1} parent=1 // pred_check_branch
      %20 = sbr.rel (0) target = $region17
    $region16: #{tpu_custom_call.1} parent=1 // pred_region
      _
    $region17: #{tpu_custom_call.1} parent=1 // pred_fallthru
      _
    // Predicated region
    $region18: #{tpu_custom_call.1} parent=1 // pred_check
      _
    $region19: #{tpu_custom_call.1} parent=1 // pred_check_branch
      %22 = sbr.rel (0) target = $region21
    $region20: #{tpu_custom_call.1} parent=1 // pred_region
      _
    $region21: #{tpu_custom_call.1} parent=1 // pred_fallthru
      _
    // Predicated region
    $region22: #{tpu_custom_call.1} parent=1 // pred_check
      _
    $region23: #{tpu_custom_call.1} parent=1 // pred_check_branch
      %24 = sbr.rel (0) target = $region25
    $region24: #{tpu_custom_call.1} parent=1 // pred_region
      _
    $region25: #{tpu_custom_call.1} parent=1 // pred_fallthru
      _
    // Predicated region
    $region26: #{tpu_custom_call.1} parent=1 // pred_check
      _
    $region27: #{tpu_custom_call.1} parent=1 // pred_check_branch
      %26 = sbr.rel (0) target = $region29
    $region28: #{tpu_custom_call.1} parent=1 // pred_region
      _
    $region29: #{tpu_custom_call.1} parent=1 // pred_fallthru
      _
    %v27 = vld [vmem:[%s0] sm:$0xff]
    %v28 = vld [vmem:[%s1] sm:$0xff]
    %v29 = vld [vmem:[%s1 + $0x8] sm:$0xff]
    %v30 = vld [vmem:[%s1 + $0x10] sm:$0xff]
    %v31 = vld [vmem:[%s1 + $0x18] sm:$0xff]
    %v32 = vld [vmem:[%s2] sm:$0xff]
    %v33 = vld [vmem:[%s2 + $0x8] sm:$0xff]
    %v34 = vld [vmem:[%s2 + $0x10] sm:$0xff]
    %v35 = vld [vmem:[%s2 + $0x18] sm:$0xff]
    %37 = vset.pattern.permute.xlu0 0
    %38 = vperm.xlu0 %37, %v32
    %v39 = vpop.permute.xlu0 %38
    %42 = vset.pattern.permute.xlu0 0
    %43 = vperm.xlu0 %42, %v33
    %v44 = vpop.permute.xlu0 %43
    %47 = vset.pattern.permute.xlu0 0
    %48 = vperm.xlu0 %47, %v34
    %v49 = vpop.permute.xlu0 %48
    %52 = vset.pattern.permute.xlu0 0
    %53 = vperm.xlu0 %52, %v35
    %v54 = vpop.permute.xlu0 %53
    %vm56 = vcmask 130048
    %v58 = vsel %vm56, %v28, 0
    %v61 = vsel %vm56, %v29, 0
    %v64 = vsel %vm56, %v30, 0
    %v67 = vsel %vm56, %v31, 0
    %v70 = vsel %vm56, %v27, 0
    %72 = vmatprep.subr.mxu0 0.0
    %73 = vmatpush1.xpose.msra.mxu0 %v70
    %74 = vmatprep.subr.mxu0 0.0
    %75 = vmatpush1.xpose.msra.mxu0 0.0
    %76 = vmatprep.subr.mxu0 0.0
    %77 = vmatpush1.xpose.msra.mxu0 0.0
    %78 = vmatprep.subr.mxu0 0.0
    %79 = vmatpush1.xpose.msra.mxu0 0.0
    %80 = vmatprep.subr.mxu0 0.0
    %81 = vmatpush1.xpose.msra.mxu0 0.0
    %82 = vmatprep.subr.mxu0 0.0
    %83 = vmatpush1.xpose.msra.mxu0 0.0
    %84 = vmatprep.subr.mxu0 0.0
    %85 = vmatpush1.xpose.msra.mxu0 0.0
    %86 = vmatprep.subr.mxu0 0.0
    %87 = vmatpush1.xpose.msra.mxu0 0.0
    %88 = vmatprep.subr.mxu0 0.0
    %89 = vmatpush1.xpose.msra.mxu0 0.0
    %90 = vmatprep.subr.mxu0 0.0
    %91 = vmatpush1.xpose.msra.mxu0 0.0
    %92 = vmatprep.subr.mxu0 0.0
    %93 = vmatpush1.xpose.msra.mxu0 0.0
    %94 = vmatprep.subr.mxu0 0.0
    %95 = vmatpush1.xpose.msra.mxu0 0.0
    %96 = vmatprep.subr.mxu0 0.0
    %97 = vmatpush1.xpose.msra.mxu0 0.0
    %98 = vmatprep.subr.mxu0 0.0
    %99 = vmatpush1.xpose.msra.mxu0 0.0
    %100 = vmatprep.subr.mxu0 0.0
    %101 = vmatpush1.xpose.msra.mxu0 0.0
    %102 = vmatprep.subr.mxu0 0.0
    %103 = vmatpush1.xpose.msra.mxu0 0.0
    %104 = vmatprep.subr.mxu0 0.0
    %105 = vmatpush1.xpose.msra.mxu0 0.0
    %106 = vmatprep.subr.mxu0 0.0
    %107 = vmatpush1.xpose.msra.mxu0 0.0
    %108 = vmatprep.subr.mxu0 0.0
    %109 = vmatpush1.xpose.msra.mxu0 0.0
    %110 = vmatprep.subr.mxu0 0.0
    %111 = vmatpush1.xpose.msra.mxu0 0.0
    %112 = vmatprep.subr.mxu0 0.0
    %113 = vmatpush1.xpose.msra.mxu0 0.0
    %114 = vmatprep.subr.mxu0 0.0
    %115 = vmatpush1.xpose.msra.mxu0 0.0
    %116 = vmatprep.subr.mxu0 0.0
    %117 = vmatpush1.xpose.msra.mxu0 0.0
    %118 = vmatprep.subr.mxu0 0.0
    %119 = vmatpush1.xpose.msra.mxu0 0.0
    %120 = vmatprep.subr.mxu0 0.0
    %121 = vmatpush1.xpose.msra.mxu0 0.0
    %122 = vmatprep.subr.mxu0 0.0
    %123 = vmatpush1.xpose.msra.mxu0 0.0
    %124 = vmatprep.subr.mxu0 0.0
    %125 = vmatpush1.xpose.msra.mxu0 0.0
    %126 = vmatprep.subr.mxu0 0.0
    %127 = vmatpush1.xpose.msra.mxu0 0.0
    %128 = vmatprep.subr.mxu0 0.0
    %129 = vmatpush1.xpose.msra.mxu0 0.0
    %130 = vmatprep.subr.mxu0 0.0
    %131 = vmatpush1.xpose.msra.mxu0 0.0
    %132 = vmatprep.subr.mxu0 0.0
    %133 = vmatpush1.xpose.msra.mxu0 0.0
    %134 = vmatprep.subr.mxu0 0.0
    %135 = vmatpush1.xpose.msra.mxu0 0.0
    %136 = vmatprep.mubr.f32.mxu0 0.0
    %137 = vmatmul.mubr.f32.gmra.mrb[0].mxu0 %v58
    %v138 = vpop.f32.mrb[0].mxu0
    %v139 = vadd.f32 %v39, %v138
    %v140 = vpop.f32.mrb[0].mxu0
    %141 = vmatprep.mubr.f32.mxu0 0.0
    %142 = vmatmul.mubr.f32.gmra.mrb[0].mxu0 %v61
    %v143 = vpop.f32.mrb[0].mxu0
    %v144 = vadd.f32 %v44, %v143
    %v145 = vpop.f32.mrb[0].mxu0
    %146 = vmatprep.mubr.f32.mxu0 0.0
    %147 = vmatmul.mubr.f32.gmra.mrb[0].mxu0 %v64
    %v148 = vpop.f32.mrb[0].mxu0
    %v149 = vadd.f32 %v49, %v148
    %v150 = vpop.f32.mrb[0].mxu0
    %151 = vmatprep.mubr.f32.mxu0 0.0
    %152 = vmatmul.mubr.f32.gmra.mrb[0].mxu0 %v67
    %v153 = vpop.f32.mrb[0].mxu0
    %v154 = vadd.f32 %v54, %v153
    %v155 = vpop.f32.mrb[0].mxu0
    %156 = vdwg.mxu0
    %v157 = vsub.f32 0.0, %v139
    %v158 = vsub.f32 0.0, %v144
    %v159 = vsub.f32 0.0, %v149
    %v160 = vsub.f32 0.0, %v154
    %v161 = vmul.f32 %v157, 1.442695
    %v162 = vpow.pop %v161
    %v163 = vmul.f32 %v158, 1.442695
    %v164 = vpow.pop %v163
    %v165 = vmul.f32 %v159, 1.442695
    %v166 = vpow.pop %v165
    %v167 = vmul.f32 %v160, 1.442695
    %v168 = vpow.pop %v167
    %v169 = vadd.f32 %v162, 1.0
    %v170 = vadd.f32 %v164, 1.0
    %v171 = vadd.f32 %v166, 1.0
    %v172 = vadd.f32 %v168, 1.0
    %v173 = vrcp.pop %v169
    %v174 = vrcp.pop %v170
    %v175 = vrcp.pop %v171
    %v176 = vrcp.pop %v172
    %v177 = vld [vmem:[%s3] sm:$0xff]
    %v178 = vld [vmem:[%s3 + $0x8] sm:$0xff]
    %v179 = vld [vmem:[%s3 + $0x10] sm:$0xff]
    %v180 = vld [vmem:[%s3 + $0x18] sm:$0xff]
    %v181 = vld [vmem:[%s4] sm:$0xff]
    %v182 = vld [vmem:[%s4 + $0x8] sm:$0xff]
    %v183 = vld [vmem:[%s4 + $0x10] sm:$0xff]
    %v184 = vld [vmem:[%s4 + $0x18] sm:$0xff]
    %186 = vset.pattern.permute.xlu0 0
    %187 = vperm.xlu0 %186, %v181
    %v188 = vpop.permute.xlu0 %187
    %191 = vset.pattern.permute.xlu0 0
    %192 = vperm.xlu0 %191, %v182
    %v193 = vpop.permute.xlu0 %192
    %196 = vset.pattern.permute.xlu0 0
    %197 = vperm.xlu0 %196, %v183
    %v198 = vpop.permute.xlu0 %197
    %201 = vset.pattern.permute.xlu0 0
    %202 = vperm.xlu0 %201, %v184
    %v203 = vpop.permute.xlu0 %202
    %vm205 = vcmask 261120
    %v207 = vsel %vm205, %v177, 0
    %v210 = vsel %vm205, %v178, 0
    %v213 = vsel %vm205, %v179, 0
    %v216 = vsel %vm205, %v180, 0
    %218 = vmatprep.subr.mxu0 0.0
    %219 = vmatpush1.msra.mxu0 %v173
    %220 = vmatprep.subr.mxu0 0.0
    %221 = vmatpush1.msra.mxu0 %v174
    %222 = vmatprep.subr.mxu0 0.0
    %223 = vmatpush1.msra.mxu0 %v175
    %224 = vmatprep.subr.mxu0 0.0
    %225 = vmatpush1.msra.mxu0 %v176
    %226 = vmatprep.subr.mxu0 0.0
    %227 = vmatpush1.msra.mxu0 0.0
    %228 = vmatprep.subr.mxu0 0.0
    %229 = vmatpush1.msra.mxu0 0.0
    %230 = vmatprep.subr.mxu0 0.0
    %231 = vmatpush1.msra.mxu0 0.0
    %232 = vmatprep.subr.mxu0 0.0
    %233 = vmatpush1.msra.mxu0 0.0
    %234 = vmatprep.subr.mxu0 0.0
    %235 = vmatpush1.msra.mxu0 0.0
    %236 = vmatprep.subr.mxu0 0.0
    %237 = vmatpush1.msra.mxu0 0.0
    %238 = vmatprep.subr.mxu0 0.0
    %239 = vmatpush1.msra.mxu0 0.0
    %240 = vmatprep.subr.mxu0 0.0
    %241 = vmatpush1.msra.mxu0 0.0
    %242 = vmatprep.subr.mxu0 0.0
    %243 = vmatpush1.msra.mxu0 0.0
    %244 = vmatprep.subr.mxu0 0.0
    %245 = vmatpush1.msra.mxu0 0.0
    %246 = vmatprep.subr.mxu0 0.0
    %247 = vmatpush1.msra.mxu0 0.0
    %248 = vmatprep.subr.mxu0 0.0
    %249 = vmatpush1.msra.mxu0 0.0
    %250 = vmatprep.subr.mxu0 0.0
    %251 = vmatpush1.msra.mxu0 0.0
    %252 = vmatprep.subr.mxu0 0.0
    %253 = vmatpush1.msra.mxu0 0.0
    %254 = vmatprep.subr.mxu0 0.0
    %255 = vmatpush1.msra.mxu0 0.0
    %256 = vmatprep.subr.mxu0 0.0
    %257 = vmatpush1.msra.mxu0 0.0
    %258 = vmatprep.subr.mxu0 0.0
    %259 = vmatpush1.msra.mxu0 0.0
    %260 = vmatprep.subr.mxu0 0.0
    %261 = vmatpush1.msra.mxu0 0.0
    %262 = vmatprep.subr.mxu0 0.0
    %263 = vmatpush1.msra.mxu0 0.0
    %264 = vmatprep.subr.mxu0 0.0
    %265 = vmatpush1.msra.mxu0 0.0
    %266 = vmatprep.subr.mxu0 0.0
    %267 = vmatpush1.msra.mxu0 0.0
    %268 = vmatprep.subr.mxu0 0.0
    %269 = vmatpush1.msra.mxu0 0.0
    %270 = vmatprep.subr.mxu0 0.0
    %271 = vmatpush1.msra.mxu0 0.0
    %272 = vmatprep.subr.mxu0 0.0
    %273 = vmatpush1.msra.mxu0 0.0
    %274 = vmatprep.subr.mxu0 0.0
    %275 = vmatpush1.msra.mxu0 0.0
    %276 = vmatprep.subr.mxu0 0.0
    %277 = vmatpush1.msra.mxu0 0.0
    %278 = vmatprep.subr.mxu0 0.0
    %279 = vmatpush1.msra.mxu0 0.0
    %280 = vmatprep.subr.mxu0 0.0
    %281 = vmatpush1.msra.mxu0 0.0
    %282 = vmatprep.mubr.f32.mxu0 0.0
    %283 = vmatmul.mubr.f32.gmra.mrb[0].mxu0 %v207
    %v284 = vpop.f32.mrb[0].mxu0
    %v285 = vadd.f32 %v188, %v284
    %v286 = vpop.f32.mrb[0].mxu0
    %287 = vmatprep.mubr.f32.mxu0 0.0
    %288 = vmatmul.mubr.f32.gmra.mrb[0].mxu0 %v210
    %v289 = vpop.f32.mrb[0].mxu0
    %v290 = vadd.f32 %v193, %v289
    %v291 = vpop.f32.mrb[0].mxu0
    %292 = vmatprep.mubr.f32.mxu0 0.0
    %293 = vmatmul.mubr.f32.gmra.mrb[0].mxu0 %v213
    %v294 = vpop.f32.mrb[0].mxu0
    %v295 = vadd.f32 %v198, %v294
    %v296 = vpop.f32.mrb[0].mxu0
    %297 = vmatprep.mubr.f32.mxu0 0.0
    %298 = vmatmul.mubr.f32.gmra.mrb[0].mxu0 %v216
    %v299 = vpop.f32.mrb[0].mxu0
    %v300 = vadd.f32 %v203, %v299
    %v301 = vpop.f32.mrb[0].mxu0
    %302 = vdwg.mxu0
    %v303 = vsub.f32 0.0, %v285
    %v304 = vsub.f32 0.0, %v290
    %v305 = vsub.f32 0.0, %v295
    %v306 = vsub.f32 0.0, %v300
    %v307 = vmul.f32 %v303, 1.442695
    %v308 = vpow.pop %v307
    %v309 = vmul.f32 %v304, 1.442695
    %v310 = vpow.pop %v309
    %v311 = vmul.f32 %v305, 1.442695
    %v312 = vpow.pop %v311
    %v313 = vmul.f32 %v306, 1.442695
    %v314 = vpow.pop %v313
    %v315 = vadd.f32 %v308, 1.0
    %v316 = vadd.f32 %v310, 1.0
    %v317 = vadd.f32 %v312, 1.0
    %v318 = vadd.f32 %v314, 1.0
    %v319 = vrcp.pop %v315
    %v320 = vrcp.pop %v316
    %v321 = vrcp.pop %v317
    %v322 = vrcp.pop %v318
    %v323 = vld [vmem:[%s5] sm:$0xf]
    %v324 = vld [vmem:[%s6] sm:$0xf]
    %326 = vset.pattern.permute.xlu0 0
    %327 = vperm.xlu0 %326, %v324
    %v328 = vpop.permute.xlu0 %327
    %v331 = vsel %vm205, %v323, 0
    %333 = vmatprep.subr.mxu0 0.0
    %334 = vmatpush1.msra.mxu0 %v319
    %335 = vmatprep.subr.mxu0 0.0
    %336 = vmatpush1.msra.mxu0 %v320
    %337 = vmatprep.subr.mxu0 0.0
    %338 = vmatpush1.msra.mxu0 %v321
    %339 = vmatprep.subr.mxu0 0.0
    %340 = vmatpush1.msra.mxu0 %v322
    %341 = vmatprep.subr.mxu0 0.0
    %342 = vmatpush1.msra.mxu0 0.0
    %343 = vmatprep.subr.mxu0 0.0
    %344 = vmatpush1.msra.mxu0 0.0
    %345 = vmatprep.subr.mxu0 0.0
    %346 = vmatpush1.msra.mxu0 0.0
    %347 = vmatprep.subr.mxu0 0.0
    %348 = vmatpush1.msra.mxu0 0.0
    %349 = vmatprep.subr.mxu0 0.0
    %350 = vmatpush1.msra.mxu0 0.0
    %351 = vmatprep.subr.mxu0 0.0
    %352 = vmatpush1.msra.mxu0 0.0
    %353 = vmatprep.subr.mxu0 0.0
    %354 = vmatpush1.msra.mxu0 0.0
    %355 = vmatprep.subr.mxu0 0.0
    %356 = vmatpush1.msra.mxu0 0.0
    %357 = vmatprep.subr.mxu0 0.0
    %358 = vmatpush1.msra.mxu0 0.0
    %359 = vmatprep.subr.mxu0 0.0
    %360 = vmatpush1.msra.mxu0 0.0
    %361 = vmatprep.subr.mxu0 0.0
    %362 = vmatpush1.msra.mxu0 0.0
    %363 = vmatprep.subr.mxu0 0.0
    %364 = vmatpush1.msra.mxu0 0.0
    %365 = vmatprep.subr.mxu0 0.0
    %366 = vmatpush1.msra.mxu0 0.0
    %367 = vmatprep.subr.mxu0 0.0
    %368 = vmatpush1.msra.mxu0 0.0
    %369 = vmatprep.subr.mxu0 0.0
    %370 = vmatpush1.msra.mxu0 0.0
    %371 = vmatprep.subr.mxu0 0.0
    %372 = vmatpush1.msra.mxu0 0.0
    %373 = vmatprep.subr.mxu0 0.0
    %374 = vmatpush1.msra.mxu0 0.0
    %375 = vmatprep.subr.mxu0 0.0
    %376 = vmatpush1.msra.mxu0 0.0
    %377 = vmatprep.subr.mxu0 0.0
    %378 = vmatpush1.msra.mxu0 0.0
    %379 = vmatprep.subr.mxu0 0.0
    %380 = vmatpush1.msra.mxu0 0.0
    %381 = vmatprep.subr.mxu0 0.0
    %382 = vmatpush1.msra.mxu0 0.0
    %383 = vmatprep.subr.mxu0 0.0
    %384 = vmatpush1.msra.mxu0 0.0
    %385 = vmatprep.subr.mxu0 0.0
    %386 = vmatpush1.msra.mxu0 0.0
    %387 = vmatprep.subr.mxu0 0.0
    %388 = vmatpush1.msra.mxu0 0.0
    %389 = vmatprep.subr.mxu0 0.0
    %390 = vmatpush1.msra.mxu0 0.0
    %391 = vmatprep.subr.mxu0 0.0
    %392 = vmatpush1.msra.mxu0 0.0
    %393 = vmatprep.subr.mxu0 0.0
    %394 = vmatpush1.msra.mxu0 0.0
    %395 = vmatprep.subr.mxu0 0.0
    %396 = vmatpush1.msra.mxu0 0.0
    %397 = vmatprep.mubr.f32.mxu0 0.0
    %398 = vmatmul.mubr.f32.gmra.mrb[0].mxu0 %v331
    %v399 = vpop.f32.mrb[0].mxu0
    %v400 = vadd.f32 %v328, %v399
    %v401 = vpop.f32.mrb[0].mxu0
    %402 = vdwg.mxu0
    %vm403 = vcmask 60416
    %404 = vst.msk [vmem:[#allocation2] sm:$0xf] %vm403, %v400
    // Predicated region
    $region30: #{tpu_custom_call.1} parent=1 // pred_check
      _
    $region31: #{tpu_custom_call.1} parent=1 // pred_check_branch
      %406 = sbr.rel (0) target = $region33
    $region32: #{tpu_custom_call.1} parent=1 // pred_region
      %s408 = ssub.s32 64, 64
      %409 = vsyncadd [#allocation3], %s408
      %s411 = sshll.u32 [#allocation2], 4
      %s412 = int_to_ptr.vmem [resolvable:$true] %s411
      %414 = dma.vmem_to_hbm [thread:$0]  %s412, 64, %s7, [#allocation3]
    $region33: #{tpu_custom_call.1} parent=1 // pred_fallthru
      _
    // Predicated region
    $region34: #{tpu_custom_call.1} parent=1 // pred_check
      _
    $region35: #{tpu_custom_call.1} parent=1 // pred_check_branch
      %416 = sbr.rel (0) target = $region37
    $region36: #{tpu_custom_call.1} parent=1 // pred_region
      %417 = dma.done [#allocation3], 64
    $region37: #{tpu_custom_call.1} parent=1 // pred_fallthru
      _
    %418 = vsyncpa [#allocation3], 1

</llo_original>
